<compile_context>
chip_gen: v7x
topology: tpu7x:2x2x1
jax: 0.10.0
libtpu: 0.0.40
codegen_flags: <defaults>
</compile_context>

<pallas_src>
import functools

import jax
import jax.numpy as jnp
from jax.experimental import pallas as pl
from jax.experimental.pallas import tpu as pltpu


_MemSpace = getattr(pltpu, "MemorySpace", None) or getattr(pltpu, "TPUMemorySpace")

# Scoped-VMEM limit: above the per-generation defaults, never more than ~3/4 of
# physical VMEM (v7x has only 64 MiB).
try:
    _VMEM_LIMIT = min(64 * 1024 * 1024,
                      int(pltpu.get_tpu_info().vmem_capacity_bytes) * 3 // 4)
except Exception:
    _VMEM_LIMIT = 32 * 1024 * 1024
_TILE_BUDGET = _VMEM_LIMIT // 2
# Bigger row tiles on big-VMEM parts (v5e/v6e, 128 MiB VMEM); tighter on v7x.
_TM_CAP = 1024 if _VMEM_LIMIT > 48 * 1024 * 1024 else 512

_HALO_IMG_ROWS = 4   # halo block height (in padded-image rows); >= 3 required


def _cparams(n_grid_axes=1):
    return pltpu.CompilerParams(
        dimension_semantics=("parallel",) * n_grid_axes,
        vmem_limit_bytes=_VMEM_LIMIT)


def _resident():
    # Whole-array operand kept resident in VMEM (no per-step double buffering).
    return pl.BlockSpec(memory_space=_MemSpace.VMEM)


def _round_up(x, m):
    return (x + m - 1) // m * m


def _choose_tm(m, k, n, *, extra_k=0, extra_k_bytes=2, out_bytes=2):
    """VMEM-budget-driven row tile for the 1x1-conv matmul kernels."""
    tm = min(_TM_CAP, max(128, _round_up(m, 128)))

    def vmem_need(t):
        lhs = 2 * t * k * 2 + 2 * t * extra_k * extra_k_bytes   # double-buffered inputs
        out = 2 * t * n * out_bytes                             # double-buffered output
        wts = (k + extra_k) * n * 2 + 16 * n                    # resident weights + BN
        return lhs + out + wts

    while tm > 128 and vmem_need(tm) > _TILE_BUDGET:
        tm //= 2
    # prefer >=2 grid steps (pipelining / megacore) but keep a sane minimum
    while tm > 128 and pl.cdiv(m, tm) < 2:
        tm //= 2
    return tm


def _choose_conv2_row_tile(n_imgs, h, wq, cp):
    """Output-row tile TH (multiple of 8) for the stride-1 3x3 conv."""
    def vmem_need(th):
        row = wq * cp
        return (2 * th * row * 2                     # main lhs bf16, double-buffered
                + 2 * _HALO_IMG_ROWS * row * 2       # halo lhs
                + 2 * th * row * 2                   # bf16 output, double-buffered
                + th * row * 4                       # f32 accumulator scratch
                + 9 * cp * cp * 2 + 2 * cp * 4)      # resident weights + folded BN

    th = _round_up(max(h, 8), 8)
    while th > 8 and vmem_need(th) > _TILE_BUDGET:   # v7x: 64 MiB VMEM
        th = _round_up(th // 2, 8)
    # >=4 total grid steps when possible (megacore on v7x + pipeline overlap)
    while th > 8 and n_imgs * (_round_up(h, th) // th) < 4:
        th = _round_up(th // 2, 8)
    return th, _round_up(h, th)


# ----------------------------- Pallas kernels ------------------------------

def _mm_bn_relu_kernel(x_ref, w_ref, s_ref, b_ref, o_ref):
    # (tm, K)bf16 @ (K, N)bf16 -> f32 acc -> folded-BN affine -> ReLU
    acc = jnp.dot(x_ref[...], w_ref[...], preferred_element_type=jnp.float32)
    y = acc * s_ref[...] + b_ref[...]
    o_ref[...] = jnp.maximum(y, 0.0).astype(o_ref.dtype)


def _mm_bn_ds_add_relu_kernel(y2_ref, xd_ref, w3_ref, s3_ref, b3_ref,
                              wd_ref, sd_ref, bd_ref, o_ref):
    # conv3 + BN3 fused with the downsample 1x1 conv + BNd, residual add, ReLU
    main = jnp.dot(y2_ref[...], w3_ref[...], preferred_element_type=jnp.float32)
    main = main * s3_ref[...] + b3_ref[...]
    res = jnp.dot(xd_ref[...], wd_ref[...], preferred_element_type=jnp.float32)
    res = res * sd_ref[...] + bd_ref[...]
    o_ref[...] = jnp.maximum(main + res, 0.0).astype(o_ref.dtype)


def _mm_bn_id_add_relu_kernel(y2_ref, r_ref, w3_ref, s3_ref, b3_ref, o_ref):
    # conv3 + BN3 + identity residual (f32) add + ReLU
    main = jnp.dot(y2_ref[...], w3_ref[...], preferred_element_type=jnp.float32)
    main = main * s3_ref[...] + b3_ref[...]
    o_ref[...] = jnp.maximum(main + r_ref[...].astype(jnp.float32),
                             0.0).astype(o_ref.dtype)


def _conv3x3_s1_kernel(xm_ref, xh_ref, w_ref, sc_ref, sh_ref, o_ref, acc_ref,
                       *, th, wq):
    # Row-tiled stride-1 3x3 conv: each tap is a static flat row-offset slice
    # of the padded slab (pitch wq); the 2 trailing padded rows live in the
    # small halo block.  Accumulate into an explicit f32 VMEM scratch.
    rows = th * wq
    first = True
    for kh in range(3):
        for kw in range(3):
            r0 = kh * wq + kw
            wk = w_ref[kh * 3 + kw]                                   # (cp, cp)
            pm = jnp.dot(xm_ref[0, r0:rows, :], wk,
                         preferred_element_type=jnp.float32)
            if first:                       # tap (0,0): r0 == 0, covers all rows
                acc_ref[...] = pm
                first = False
            else:
                acc_ref[0:rows - r0, :] += pm
                if r0:
                    acc_ref[rows - r0:rows, :] += jnp.dot(
                        xh_ref[0, 0:r0, :], wk,
                        preferred_element_type=jnp.float32)
    y = acc_ref[...] * sc_ref[...] + sh_ref[...]
    o_ref[0] = jnp.maximum(y, 0.0).astype(o_ref.dtype)


def _conv3x3_s2_kernel(*refs, ho, wo):
    # stride-2 3x3 conv via 6 tap-phase slabs; taps sliced straight off Refs.
    tap_refs = refs[:6]
    w_ref, sc_ref, sh_ref, o_ref, acc_ref = refs[6:]
    m = ho * wo
    first = True
    for kh in range(3):
        r0 = (kh // 2) * wo
        for kw in range(3):
            lhs = tap_refs[(kh % 2) * 3 + kw][0, r0:r0 + m, :]
            p = jnp.dot(lhs, w_ref[kh * 3 + kw],
                        preferred_element_type=jnp.float32)
            if first:
                acc_ref[...] = p
                first = False
            else:
                acc_ref[...] += p
    y = acc_ref[...] * sc_ref[...] + sh_ref[...]
    o_ref[0] = jnp.maximum(y, 0.0).astype(o_ref.dtype)


# ----------------------------- kernel wrappers ------------------------------

def matmul_bn_relu(x, w, scale, shift):
    m, k = x.shape
    n = w.shape[1]
    tm = _choose_tm(m, k, n, out_bytes=2)
    mp = _round_up(m, tm)
    if mp != m:
        x = jnp.pad(x, ((0, mp - m), (0, 0)))
    out = pl.pallas_call(
        _mm_bn_relu_kernel,
        out_shape=jax.ShapeDtypeStruct((mp, n), jnp.bfloat16),
        grid=(mp // tm,),
        in_specs=[
            pl.BlockSpec((tm, k), lambda i: (i, 0)),
            _resident(),   # weights
            _resident(),   # folded BN scale
            _resident(),   # folded BN shift
        ],
        out_specs=pl.BlockSpec((tm, n), lambda i: (i, 0)),
        compiler_params=_cparams(1),
    )(x, w, scale.reshape(1, n), shift.reshape(1, n))
    return out[:m] if mp != m else out


def conv3x3_s1_bn_relu(y1_nhwc, w2_9kk, scale, shift):
    """3x3 conv (stride 1, pad 1) + folded BN + ReLU, row-tiled.

    Returns (out, ht, wq) with out of shape (n, ht*wq, cp) bf16 in the padded
    (ht, wq) layout (junk rows/cols are discarded by the caller after conv3).
    """
    n, h, w, cp = y1_nhwc.shape
    wq = _round_up(w + 2, 8)                       # sublane-friendly row pitch
    th, ht = _choose_conv2_row_tile(n, h, wq, cp)
    nt = ht // th
    rows = th * wq
    halo_rows = _HALO_IMG_ROWS * wq

    # 1 top/left pad row/col (the conv padding) + bottom/right zero filler so
    # every main/halo block is in-bounds and block-divisible.
    xpad = jnp.pad(y1_nhwc,
                   ((0, 0), (1, ht + th - h - 1), (1, wq - w - 1), (0, 0)))
    xflat = xpad.reshape(n, (ht + th) * wq, cp)

    kern = functools.partial(_conv3x3_s1_kernel, th=th, wq=wq)
    out = pl.pallas_call(
        kern,
        out_shape=jax.ShapeDtypeStruct((n, ht * wq, cp), jnp.bfloat16),
        grid=(n, nt),
        in_specs=[
            pl.BlockSpec((1, rows, cp), lambda b, t: (b, t, 0)),       # main tile
            pl.BlockSpec((1, halo_rows, cp),
                         lambda b, t: (b, (t + 1) * (th // _HALO_IMG_ROWS), 0)),
            _resident(),   # (9, cp, cp) weights, resident in VMEM
            _resident(),   # folded BN scale
            _resident(),   # folded BN shift
        ],
        out_specs=pl.BlockSpec((1, rows, cp), lambda b, t: (b, t, 0)),
        scratch_shapes=[pltpu.VMEM((rows, cp), jnp.float32)],
        compiler_params=_cparams(2),
    )(xflat, xflat, w2_9kk, scale.reshape(1, cp), shift.reshape(1, cp))
    return out, ht, wq


def conv3x3_s2_bn_relu(y1_nhwc, w2_9kk, scale, shift):
    """3x3 conv (stride 2, pad 1) + folded BN + ReLU via tap-phase slabs."""
    # TODO(synk): stride-2 feature maps in ResNet are small enough that one
    # image per grid step fits VMEM comfortably; no row tiling here.
    n, h, w, cp = y1_nhwc.shape
    ho = (h - 1) // 2 + 1
    wo = (w - 1) // 2 + 1
    ph_h = 1 + ho
    xp = jnp.pad(y1_nhwc, ((0, 0), (1, 1), (1, 1), (0, 0)))

    taps = []
    for a in range(2):
        for kw in range(3):
            t = xp[:, a::2, kw::2, :][:, :ph_h, :wo, :]
            dh = ph_h - t.shape[1]
            if dh:
                t = jnp.pad(t, ((0, 0), (0, dh), (0, 0), (0, 0)))
            taps.append(t.reshape(n, ph_h * wo, cp))

    kern = functools.partial(_conv3x3_s2_kernel, ho=ho, wo=wo)
    out = pl.pallas_call(
        kern,
        out_shape=jax.ShapeDtypeStruct((n, ho * wo, cp), jnp.bfloat16),
        grid=(n,),
        in_specs=[pl.BlockSpec((1, ph_h * wo, cp), lambda i: (i, 0, 0))
                  for _ in taps] + [_resident(), _resident(), _resident()],
        out_specs=pl.BlockSpec((1, ho * wo, cp), lambda i: (i, 0, 0)),
        scratch_shapes=[pltpu.VMEM((ho * wo, cp), jnp.float32)],
        compiler_params=_cparams(1),
    )(*taps, w2_9kk, scale.reshape(1, cp), shift.reshape(1, cp))
    return out.reshape(n * ho * wo, cp), ho, wo


def matmul_bn_add_relu_ds(y2, xd, w3, s3, b3, wd, sd, bd):
    m, k = y2.shape
    kd = xd.shape[1]
    n = w3.shape[1]
    tm = _choose_tm(m, k, n, extra_k=kd, extra_k_bytes=2, out_bytes=4)
    mp = _round_up(m, tm)
    if mp != m:
        y2 = jnp.pad(y2, ((0, mp - m), (0, 0)))
        xd = jnp.pad(xd, ((0, mp - m), (0, 0)))
    # f32 output: this IS the module output; the residual add + ReLU match
    # PyTorch's f32 epilogue exactly.
    out = pl.pallas_call(
        _mm_bn_ds_add_relu_kernel,
        out_shape=jax.ShapeDtypeStruct((mp, n), jnp.float32),
        grid=(mp // tm,),
        in_specs=[
            pl.BlockSpec((tm, k), lambda i: (i, 0)),
            pl.BlockSpec((tm, kd), lambda i: (i, 0)),
            _resident(), _resident(), _resident(),
            _resident(), _resident(), _resident(),
        ],
        out_specs=pl.BlockSpec((tm, n), lambda i: (i, 0)),
        compiler_params=_cparams(1),
    )(y2, xd, w3, s3.reshape(1, n), b3.reshape(1, n),
      wd, sd.reshape(1, n), bd.reshape(1, n))
    return out[:m] if mp != m else out


def matmul_bn_add_relu_id(y2, r, w3, s3, b3):
    m, k = y2.shape
    n = w3.shape[1]
    tm = _choose_tm(m, k, n, extra_k=n, extra_k_bytes=4, out_bytes=4)
    mp = _round_up(m, tm)
    if mp != m:
        y2 = jnp.pad(y2, ((0, mp - m), (0, 0)))
        r = jnp.pad(r, ((0, mp - m), (0, 0)))
    out = pl.pallas_call(
        _mm_bn_id_add_relu_kernel,
        out_shape=jax.ShapeDtypeStruct((mp, n), jnp.float32),
        grid=(mp // tm,),
        in_specs=[
            pl.BlockSpec((tm, k), lambda i: (i, 0)),
            pl.BlockSpec((tm, n), lambda i: (i, 0)),   # f32 residual
            _resident(), _resident(), _resident(),
        ],
        out_specs=pl.BlockSpec((tm, n), lambda i: (i, 0)),
        compiler_params=_cparams(1),
    )(y2, r, w3, s3.reshape(1, n), b3.reshape(1, n))
    return out[:m] if mp != m else out


# ------------------------------ parameters ---------------------------------

def _fold_bn(bn, eps=1e-5):
    gamma, beta, mean, var = bn
    scale = gamma / jnp.sqrt(var + eps)
    shift = beta - mean * scale
    return scale, shift


def _pad_cols(a, cols):
    return a if a.shape[-1] == cols else jnp.pad(a, ((0, 0), (0, cols - a.shape[-1])))


def _pad_vec(v, n):
    return v if v.shape[0] == n else jnp.pad(v, (0, n - v.shape[0]))


def init_params(key, in_channels, out_channels, downsampling, expansion=4):
    c = out_channels
    ce = out_channels * expansion
    keys = jax.random.split(key, 8)

    def bn(k, ch):
        k1, k2, k3, k4 = jax.random.split(k, 4)
        gamma = jax.random.uniform(k1, (ch,), jnp.float32, 0.5, 1.5)
        beta = jax.random.normal(k2, (ch,), jnp.float32) * 0.1
        mean = jax.random.normal(k3, (ch,), jnp.float32) * 0.1
        var = jax.random.uniform(k4, (ch,), jnp.float32, 0.5, 1.5)
        return gamma, beta, mean, var

    p = {
        "w1": jax.random.normal(keys[0], (c, in_channels, 1, 1), jnp.float32) * 0.1,
        "bn1": bn(keys[1], c),
        "w2": jax.random.normal(keys[2], (c, c, 3, 3), jnp.float32) * 0.1,
        "bn2": bn(keys[3], c),
        "w3": jax.random.normal(keys[4], (ce, c, 1, 1), jnp.float32) * 0.1,
        "bn3": bn(keys[5], ce),
    }
    if downsampling:
        p["wd"] = jax.random.normal(keys[6], (ce, in_channels, 1, 1), jnp.float32) * 0.1
        p["bnd"] = bn(keys[7], ce)
    return p


# ------------------------------ forward pass --------------------------------

def bottleneck_forward(x_nchw, p, stride, downsampling):
    assert stride in (1, 2), "only stride 1 / 2 supported"
    n, cin, h, w = x_nchw.shape
    s = stride
    c = p["w1"].shape[0]
    ce = p["w3"].shape[0]

    if not downsampling:
        assert s == 1 and cin == ce, (
            "identity residual requires stride == 1 and "
            "in_channels == out_channels * expansion")

    # lane-dense channel padding (multiples of 128)
    cin_p = _round_up(cin, 128)
    c_p = _round_up(c, 128)
    ce_p = _round_up(ce, 128)

    # bf16 NHWC view of x feeds conv1 (and the downsample matmul); cast before
    # the transpose so the layout glue moves half the bytes.
    x_bf = jnp.transpose(x_nchw.astype(jnp.bfloat16), (0, 2, 3, 1))    # (n,h,w,cin)

    # ---- conv1 (1x1) + BN1 + ReLU -------------------------------------------
    w1 = jnp.transpose(p["w1"][:, :, 0, 0], (1, 0))                    # (cin, c)
    w1 = jnp.pad(w1, ((0, cin_p - cin), (0, c_p - c))).astype(jnp.bfloat16)
    s1, b1 = _fold_bn(p["bn1"])
    s1, b1 = _pad_vec(s1, c_p), _pad_vec(b1, c_p)
    x_slab = _pad_cols(x_bf.reshape(n * h * w, cin), cin_p)
    y1 = matmul_bn_relu(x_slab, w1, s1, b1)                            # (n*h*w, c_p) bf16
    y1 = y1.reshape(n, h, w, c_p)

    # ---- conv2 (3x3, stride s, pad 1) + BN2 + ReLU ---------------------------
    w2 = jnp.transpose(p["w2"], (2, 3, 1, 0))                          # (kh, kw, cin, cout)
    w2 = jnp.pad(w2, ((0, 0), (0, 0), (0, c_p - c), (0, c_p - c)))
    w2 = w2.reshape(9, c_p, c_p).astype(jnp.bfloat16)
    s2, b2 = _fold_bn(p["bn2"])
    s2, b2 = _pad_vec(s2, c_p), _pad_vec(b2, c_p)

    # ---- conv3 (1x1) + BN3 + residual + ReLU (single fused kernel) ----------
    w3 = jnp.transpose(p["w3"][:, :, 0, 0], (1, 0))                    # (c, ce)
    w3 = jnp.pad(w3, ((0, c_p - c), (0, ce_p - ce))).astype(jnp.bfloat16)
    s3, b3 = _fold_bn(p["bn3"])
    s3, b3 = _pad_vec(s3, ce_p), _pad_vec(b3, ce_p)

    if s == 1:
        y2, ht, wq = conv3x3_s1_bn_relu(y1, w2, s2, b2)    # (n, ht*wq, c_p) bf16
        y2 = y2.reshape(n * ht * wq, c_p)
        if downsampling:
            wd = jnp.transpose(p["wd"][:, :, 0, 0], (1, 0))
            wd = jnp.pad(wd, ((0, cin_p - cin), (0, ce_p - ce))).astype(jnp.bfloat16)
            sd, bd = _fold_bn(p["bnd"])
            sd, bd = _pad_vec(sd, ce_p), _pad_vec(bd, ce_p)
            xd = jnp.pad(x_bf, ((0, 0), (0, ht - h), (0, wq - w), (0, cin_p - cin)))
            xd = xd.reshape(n * ht * wq, cin_p)
            out = matmul_bn_add_relu_ds(y2, xd, w3, s3, b3, wd, sd, bd)
        else:
            # identity residual added in f32 (matches PyTorch's f32 add)
            xr = jnp.transpose(x_nchw, (0, 2, 3, 1))
            xr = jnp.pad(xr, ((0, 0), (0, ht - h), (0, wq - w), (0, ce_p - ce)))
            xr = xr.reshape(n * ht * wq, ce_p)
            out = matmul_bn_add_relu_id(y2, xr, w3, s3, b3)
        out = out.reshape(n, ht, wq, ce_p)[:, :h, :w, :ce]
    else:  # stride 2 (projection shortcut)
        y2, ho, wo = conv3x3_s2_bn_relu(y1, w2, s2, b2)    # (n*ho*wo, c_p) bf16
        wd = jnp.transpose(p["wd"][:, :, 0, 0], (1, 0))
        wd = jnp.pad(wd, ((0, cin_p - cin), (0, ce_p - ce))).astype(jnp.bfloat16)
        sd, bd = _fold_bn(p["bnd"])
        sd, bd = _pad_vec(sd, ce_p), _pad_vec(bd, ce_p)
        xd = x_bf[:, ::2, ::2, :].reshape(n * ho * wo, cin)            # 1x1 conv, stride 2
        xd = _pad_cols(xd, cin_p)
        out = matmul_bn_add_relu_ds(y2, xd, w3, s3, b3, wd, sd, bd)
        out = out.reshape(n, ho, wo, ce_p)[..., :ce]

    return jnp.transpose(out, (0, 3, 1, 2))                            # back to NCHW (f32)


# --------------------------- pure-JAX reference ------------------------------

def ref_forward(x, p, stride, downsampling):
    def conv(z, w, s, pad):
        return jax.lax.conv_general_dilated(
            z, w, (s, s), pad, dimension_numbers=("NCHW", "OIHW", "NCHW"))

    def bn(z, bnp):
        scale, shift = _fold_bn(bnp)
        return z * scale[None, :, None, None] + shift[None, :, None, None]

    y = jax.nn.relu(bn(conv(x, p["w1"], 1, [(0, 0), (0, 0)]), p["bn1"]))
    y = jax.nn.relu(bn(conv(y, p["w2"], stride, [(1, 1), (1, 1)]), p["bn2"]))
    y = bn(conv(y, p["w3"], 1, [(0, 0), (0, 0)]), p["bn3"])
    if downsampling:
        r = bn(conv(x, p["wd"], stride, [(0, 0), (0, 0)]), p["bnd"])
    else:
        r = x
    return jax.nn.relu(y + r)


if __name__ == "__main__":
    keys = jax.random.split(jax.random.PRNGKey(0), 4)

    cases = [
        # (in_channels, out_channels, stride, downsampling, H, W)
        (16, 8, 2, True, 16, 16),    # projection shortcut, stride 2
        (32, 8, 1, False, 12, 12),   # identity shortcut, stride 1
    ]
    for idx, (cin, cout, stride, ds, h, w) in enumerate(cases):
        kx, kp = jax.random.split(keys[idx])
        x = jax.random.normal(kx, (2, cin, h, w), jnp.float32)          # NCHW
        params = init_params(kp, cin, cout, ds)

        out = jax.block_until_ready(bottleneck_forward(x, params, stride, ds))
        ref = ref_forward(x, params, stride, ds)
        assert out.shape == ref.shape, (out.shape, ref.shape)

        err = float(jnp.max(jnp.abs(out - ref)))
        ref_scale = float(jnp.max(jnp.abs(ref)))
        # bf16 MXU operands (f32 accumulation) vs an all-f32 reference:
        # mixed absolute + relative bound.
        tol = 1e-2 + 4e-2 * max(1.0, ref_scale)
        if err > tol:
            raise AssertionError(
                f"case {idx}: max abs err {err} > tol {tol} (ref scale {ref_scale})")
    print("KERNEL_OK")
</pallas_src>

<mosaic_0001>
module attributes {stable_mosaic.version = 11 : i64} {
  func.func @_mm_bn_relu_kernel(%arg0: i32, %arg1: memref<256x128xbf16, #tpu.memory_space<vmem>>, %arg2: memref<128x128xbf16, #tpu.memory_space<vmem>>, %arg3: memref<1x128xf32, #tpu.memory_space<vmem>>, %arg4: memref<1x128xf32, #tpu.memory_space<vmem>>, %arg5: memref<256x128xbf16, #tpu.memory_space<vmem>>) attributes {dimension_semantics = [#tpu.dimension_semantics<parallel>], iteration_bounds = array<i64: 2>, scalar_prefetch = 0 : i64, scratch_operands = 0 : i64, tpu.core_type = #tpu.core_type<tc>, window_params = [{transform_indices = @transform_0, window_bounds = array<i64: 256, 128>}, {pipeline_mode = #tpu.pipeline_mode<synchronous>, transform_indices = @transform_1, window_bounds = array<i64: 128, 128>}, {pipeline_mode = #tpu.pipeline_mode<synchronous>, transform_indices = @transform_2, window_bounds = array<i64: 1, 128>}, {pipeline_mode = #tpu.pipeline_mode<synchronous>, transform_indices = @transform_3, window_bounds = array<i64: 1, 128>}, {transform_indices = @transform_4, window_bounds = array<i64: 256, 128>}]} {
    %c0 = arith.constant 0 : index
    %c0_0 = arith.constant 0 : index
    %0 = vector.load %arg1[%c0, %c0_0] : memref<256x128xbf16, #tpu.memory_space<vmem>>, vector<256x128xbf16>
    %c0_1 = arith.constant 0 : index
    %c0_2 = arith.constant 0 : index
    %1 = vector.load %arg2[%c0_1, %c0_2] : memref<128x128xbf16, #tpu.memory_space<vmem>>, vector<128x128xbf16>
    %cst = arith.constant dense<0.000000e+00> : vector<256x128xf32>
    %2 = tpu.matmul %0, %1, %cst {dimension_numbers = #tpu.dot_dimension_numbers<[1], [0], [0], [1], [0, 0, 1, 1], [], []>} : vector<256x128xbf16>, vector<128x128xbf16>, vector<256x128xf32> -> vector<256x128xf32>
    %c0_3 = arith.constant 0 : index
    %c0_4 = arith.constant 0 : index
    %3 = vector.load %arg3[%c0_3, %c0_4] : memref<1x128xf32, #tpu.memory_space<vmem>>, vector<1x128xf32>
    %4 = vector.broadcast %3 : vector<1x128xf32> to vector<256x128xf32>
    %5 = arith.mulf %2, %4 : vector<256x128xf32>
    %c0_5 = arith.constant 0 : index
    %c0_6 = arith.constant 0 : index
    %6 = vector.load %arg4[%c0_5, %c0_6] : memref<1x128xf32, #tpu.memory_space<vmem>>, vector<1x128xf32>
    %7 = vector.broadcast %6 : vector<1x128xf32> to vector<256x128xf32>
    %8 = arith.addf %5, %7 : vector<256x128xf32>
    %cst_7 = arith.constant 0.000000e+00 : f32
    %9 = vector.broadcast %cst_7 : f32 to vector<256x128xf32>
    %10 = arith.maximumf %8, %9 : vector<256x128xf32>
    %11 = arith.truncf %10 : vector<256x128xf32> to vector<256x128xbf16>
    %c0_8 = arith.constant 0 : index
    %c0_9 = arith.constant 0 : index
    %12 = vector.load %arg5[%c0_8, %c0_9] : memref<256x128xbf16, #tpu.memory_space<vmem>>, vector<256x128xbf16>
    tpu.vector_store %arg5[%c0_8, %c0_9], %11 {strides = array<i32>} : memref<256x128xbf16, #tpu.memory_space<vmem>>, vector<256x128xbf16>,
    return
  }
  func.func @transform_0(%arg0: i32) -> (i32, i32) {
    %c0_i32 = arith.constant 0 : i32
    %c0_i32_0 = arith.constant 0 : i32
    return %arg0, %c0_i32 : i32, i32
  }
  func.func @transform_1(%arg0: i32) -> (i32, i32) {
    %c0_i32 = arith.constant 0 : i32
    %c0_i32_0 = arith.constant 0 : i32
    %c0_i32_1 = arith.constant 0 : i32
    return %c0_i32, %c0_i32_0 : i32, i32
  }
  func.func @transform_2(%arg0: i32) -> (i32, i32) {
    %c0_i32 = arith.constant 0 : i32
    %c0_i32_0 = arith.constant 0 : i32
    %c0_i32_1 = arith.constant 0 : i32
    return %c0_i32, %c0_i32_0 : i32, i32
  }
  func.func @transform_3(%arg0: i32) -> (i32, i32) {
    %c0_i32 = arith.constant 0 : i32
    %c0_i32_0 = arith.constant 0 : i32
    %c0_i32_1 = arith.constant 0 : i32
    return %c0_i32, %c0_i32_0 : i32, i32
  }
  func.func @transform_4(%arg0: i32) -> (i32, i32) {
    %c0_i32 = arith.constant 0 : i32
    %c0_i32_0 = arith.constant 0 : i32
    return %arg0, %c0_i32 : i32, i32
  }
}

</mosaic_0001>

<llo_original>
// kernel: tpu_custom_call.1
$region0: #{tpu_custom_call.1}
  #allocation0 [shape = 'u32[]', space=smem, size = 0x4, offset = 0x4, fixed_abs, tag = 'smem constant byte address 0x4 - core index']
  #allocation1 [shape = 'u32[144,128]{1,0:T(1,128)}', space=vmem, size = 0x12000, scoped, tag = 'internal scratch']
  %s0 = inlined_call_operand.hbm [shape: bf16[512,128], index: 0, kind: input, shape index: {}]
  %s1 = inlined_call_operand.hbm [shape: bf16[128,128], index: 1, kind: input, shape index: {}]
  %s2 = inlined_call_operand.vmem [shape: f32[1,128], index: 2, kind: input, shape index: {}]
  %s3 = inlined_call_operand.vmem [shape: f32[1,128], index: 3, kind: input, shape index: {}]
  %s4 = inlined_call_operand.hbm [shape: bf16[512,128], index: 4, kind: output, shape index: {}]
  %s5 = sld [smem:[#allocation0]]
  $region57: #{tpu_custom_call.1} parent=0
    _
  %s7 = ssub.s32 1, %s5
  %s8 = scalar_select 0, %s7, %s5
  $region1: #{tpu_custom_call.1} parent=0
    #allocation2 [shape = 'u8[131072]{0}', space=vmem, size = 0x20000, scoped, tag = 'input window, operand 0']
    #allocation3 [shape = 's32[2]{0}', space=sflag, size = 0x8, scoped, tag = 'scoped memory for tpu_custom_call.1']
    #allocation4 [shape = 's32[2]{0}', space=sflag, size = 0x8, scoped, tag = 'scoped memory for tpu_custom_call.1']
    #allocation5 [shape = 'u8[32768]{0}', space=vmem, size = 0x8000, scoped, tag = 'input window, operand 1, single buffered']
    #allocation6 [shape = 's32[1]{0}', space=sflag, size = 0x4, scoped, tag = 'scoped memory for tpu_custom_call.1']
    #allocation7 [shape = 'u8[131072]{0}', space=vmem, size = 0x20000, scoped, tag = 'output window, operand 0']
    %9 = vsyncpa [#allocation3], 0
    %s10 = scalar_lea.sflag [#allocation3], 1
    %11 = vsyncpa %s10, 0
    %12 = vsyncpa [#allocation6], 0
    %13 = vsyncpa [#allocation4], 0
    %s14 = scalar_lea.sflag [#allocation4], 1
    %15 = vsyncpa %s14, 0
    loop: start=0, step=1, limit=4
    $region2: #{tpu_custom_call.1} parent=1 // loop_pre_header
      _
    $region3: #{tpu_custom_call.1} parent=1 // loop_header
      %s17 = sphi 0, %s21
      %p18 = scmp.ge.s32.totalorder %s17, 4
      %s27 = sphi 0, %s29
      %s30 = sphi 0, %s27
      %s31 = sphi 0, %s30
      %s47 = sphi 0, %s31
      %s51 = sphi 0, %s51
      %s53 = sphi 0, %s51
      %s54 = sphi 0, %s53
      %s68 = sphi 0, %s54
      %s72 = sphi 0, %s72
      %s74 = sphi 0, %s72
      %s75 = sphi 0, %s74
      %s89 = sphi 0, %s75
      %s93 = sphi 0, %s93
      %s95 = sphi 0, %s93
      %s96 = sphi 0, %s95
      %s110 = sphi 0, %s96
      %s116 = sphi 0, %s118
      %s119 = sphi 0, %s116
      %s120 = sphi 0, %s119
      %s136 = sphi 0, %s120
    $region4: #{tpu_custom_call.1} parent=1 // loop_header_branch
      %20 = sbr.rel (%p18) target = $region8
    $region5: #{tpu_custom_call.1} parent=1 // loop_body
      %s22 = ssub.s32 %s17, 1
      %s23 = ssub.s32 %s17, 2
      %s24 = sadd.s32 %s17, 1
      %s25 = ssub.s32 %s17, %s24
      %p26 = scmp.eq.s32.totalorder %s25, 0
      %s28 = sadd.s32 %s27, 1
      %s29 = scalar_select %p26, %s27, %s28
      %p32 = pneg %p26
      %p33 = scmp.eq.s32.totalorder %s17, 1
      %p34 = por %p32, %p33
      %p35 = scmp.ne.s32.totalorder %s27, %s30
      %p36 = scmp.eq.s32.totalorder %s17, 0
      %p37 = por %p35, %p36
      %p38 = scmp.ne.s32.totalorder %s27, %s30
      %p39 = scmp.eq.s32.totalorder %s22, 1
      %p40 = por %p38, %p39
      %p41 = scmp.ne.s32.totalorder %s30, %s31
      %p42 = scmp.eq.s32.totalorder %s22, 0
      %p43 = por %p41, %p42
      %p44 = scmp.ne.s32.totalorder %s30, %s31
      %p45 = scmp.eq.s32.totalorder %s23, 1
      %p46 = por %p44, %p45
      %p48 = scmp.ne.s32.totalorder %s31, %s47
      %p49 = scmp.eq.s32.totalorder %s23, 0
      %p50 = por %p48, %p49
      %s52 = sadd.s32 %s51, 1
      %p55 = scmp.eq.s32.totalorder %s17, 1
      %p56 = scmp.ne.s32.totalorder %s51, %s53
      %p57 = scmp.eq.s32.totalorder %s17, 0
      %p58 = por %p56, %p57
      %p59 = scmp.ne.s32.totalorder %s51, %s53
      %p60 = scmp.eq.s32.totalorder %s22, 1
      %p61 = por %p59, %p60
      %p62 = scmp.ne.s32.totalorder %s53, %s54
      %p63 = scmp.eq.s32.totalorder %s22, 0
      %p64 = por %p62, %p63
      %p65 = scmp.ne.s32.totalorder %s53, %s54
      %p66 = scmp.eq.s32.totalorder %s23, 1
      %p67 = por %p65, %p66
      %p69 = scmp.ne.s32.totalorder %s54, %s68
      %p70 = scmp.eq.s32.totalorder %s23, 0
      %p71 = por %p69, %p70
      %s73 = sadd.s32 %s72, 1
      %p76 = scmp.eq.s32.totalorder %s17, 1
      %p77 = scmp.ne.s32.totalorder %s72, %s74
      %p78 = scmp.eq.s32.totalorder %s17, 0
      %p79 = por %p77, %p78
      %p80 = scmp.ne.s32.totalorder %s72, %s74
      %p81 = scmp.eq.s32.totalorder %s22, 1
      %p82 = por %p80, %p81
      %p83 = scmp.ne.s32.totalorder %s74, %s75
      %p84 = scmp.eq.s32.totalorder %s22, 0
      %p85 = por %p83, %p84
      %p86 = scmp.ne.s32.totalorder %s74, %s75
      %p87 = scmp.eq.s32.totalorder %s23, 1
      %p88 = por %p86, %p87
      %p90 = scmp.ne.s32.totalorder %s75, %s89
      %p91 = scmp.eq.s32.totalorder %s23, 0
      %p92 = por %p90, %p91
      %s94 = sadd.s32 %s93, 1
      %p97 = scmp.eq.s32.totalorder %s17, 1
      %p98 = scmp.ne.s32.totalorder %s93, %s95
      %p99 = scmp.eq.s32.totalorder %s17, 0
      %p100 = por %p98, %p99
      %p101 = scmp.ne.s32.totalorder %s93, %s95
      %p102 = scmp.eq.s32.totalorder %s22, 1
      %p103 = por %p101, %p102
      %p104 = scmp.ne.s32.totalorder %s95, %s96
      %p105 = scmp.eq.s32.totalorder %s22, 0
      %p106 = por %p104, %p105
      %p107 = scmp.ne.s32.totalorder %s95, %s96
      %p108 = scmp.eq.s32.totalorder %s23, 1
      %p109 = por %p107, %p108
      %p111 = scmp.ne.s32.totalorder %s96, %s110
      %p112 = scmp.eq.s32.totalorder %s23, 0
      %p113 = por %p111, %p112
      %s114 = ssub.s32 %s17, %s24
      %p115 = scmp.eq.s32.totalorder %s114, 0
      %s117 = sadd.s32 %s116, 1
      %s118 = scalar_select %p115, %s116, %s117
      %p121 = pneg %p115
      %p122 = scmp.eq.s32.totalorder %s17, 1
      %p123 = por %p121, %p122
      %p124 = scmp.ne.s32.totalorder %s116, %s119
      %p125 = scmp.eq.s32.totalorder %s17, 0
      %p126 = por %p124, %p125
      %p127 = scmp.ne.s32.totalorder %s116, %s119
      %p128 = scmp.eq.s32.totalorder %s22, 1
      %p129 = por %p127, %p128
      %p130 = scmp.ne.s32.totalorder %s119, %s120
      %p131 = scmp.eq.s32.totalorder %s22, 0
      %p132 = por %p130, %p131
      %p133 = scmp.ne.s32.totalorder %s119, %s120
      %p134 = scmp.eq.s32.totalorder %s23, 1
      %p135 = por %p133, %p134
      %p137 = scmp.ne.s32.totalorder %s120, %s136
      %p138 = scmp.eq.s32.totalorder %s23, 0
      %p139 = por %p137, %p138
      %p140 = scmp.le.s32.totalorder 1, %s17
      %p141 = scmp.lt.s32.totalorder %s17, 3
      %p142 = pnand %p140, %p141
      %p143 = pneg %p142
      // Predicated region
      $region9: #{tpu_custom_call.1} parent=5 // pred_check
        _
      $region10: #{tpu_custom_call.1} parent=5 // pred_check_branch
        %145 = sbr.rel (%p142) target = $region12
      $region11: #{tpu_custom_call.1} parent=5 // pred_region
        %s146 = ssub.s32 %s17, 1
        // Predicated region
        $region13: #{tpu_custom_call.1} parent=11 // pred_check
          %p147 = pneg %p64
        $region14: #{tpu_custom_call.1} parent=11 // pred_check_branch
          %149 = sbr.rel (%p147) target = $region16
        $region15: #{tpu_custom_call.1} parent=11 // pred_region
          %s151 = ssub.s32 1024, 1024
          %152 = vsyncadd [#allocation6], %s151
          %s153 = sshll.u32 [#allocation5], 4
          %s154 = int_to_ptr.vmem [resolvable:$true] %s153
          %159 = dma.hbm_to_vmem [thread:$0]  %s1, 1024, %s154, [#allocation6], 64, 64, 4
        $region16: #{tpu_custom_call.1} parent=11 // pred_fallthru
          _
        // Predicated region
        $region17: #{tpu_custom_call.1} parent=11 // pred_check
          %p160 = pneg %p85
        $region18: #{tpu_custom_call.1} parent=11 // pred_check_branch
          %162 = sbr.rel (%p160) target = $region20
        $region19: #{tpu_custom_call.1} parent=11 // pred_region
          _
        $region20: #{tpu_custom_call.1} parent=11 // pred_fallthru
          _
        // Predicated region
        $region21: #{tpu_custom_call.1} parent=11 // pred_check
          %p163 = pneg %p106
        $region22: #{tpu_custom_call.1} parent=11 // pred_check_branch
          %165 = sbr.rel (%p163) target = $region24
        $region23: #{tpu_custom_call.1} parent=11 // pred_region
          _
        $region24: #{tpu_custom_call.1} parent=11 // pred_fallthru
          _
      $region12: #{tpu_custom_call.1} parent=5 // pred_fallthru
        _
      %p166 = scmp.lt.s32.totalorder %s17, 2
      // Predicated region
      $region25: #{tpu_custom_call.1} parent=5 // pred_check
        %p167 = pneg %p166
      $region26: #{tpu_custom_call.1} parent=5 // pred_check_branch
        %169 = sbr.rel (%p167) target = $region28
      $region27: #{tpu_custom_call.1} parent=5 // pred_region
        // Predicated region
        $region29: #{tpu_custom_call.1} parent=27 // pred_check
          %p170 = pneg %p37
        $region30: #{tpu_custom_call.1} parent=27 // pred_check_branch
          %172 = sbr.rel (%p170) target = $region32
        $region31: #{tpu_custom_call.1} parent=27 // pred_region
          %s173 = sand.u32 %s27, 1
          %s174 = scalar_lea.sflag [#allocation3], %s173
          %s175 = sand.u32 %s27, 1
          %s176 = smul.addr %s175, 128
          %s177 = scalar_lea.vmem [#allocation2], %s176
          %s178 = smul.u32 32, %s17
          %s180 = ssub.s32 2048, 2048
          %181 = vsyncadd %s174, %s180
          %s182 = smul.addr %s178, 64
          %s183 = scalar_lea.hbm %s0, %s182
          %s184 = sshll.u32 %s177, 4
          %s185 = int_to_ptr.vmem [resolvable:$true] %s184
          %190 = dma.hbm_to_vmem [thread:$0]  %s183, 2048, %s185, %s174, 64, 64, 4
        $region32: #{tpu_custom_call.1} parent=27 // pred_fallthru
          _
      $region28: #{tpu_custom_call.1} parent=5 // pred_fallthru
        _
      %p191 = scmp.le.s32.totalorder 1, %s17
      %p192 = scmp.lt.s32.totalorder %s17, 3
      %p193 = pnand %p191, %p192
      %p194 = pneg %p193
      // Predicated region
      $region33: #{tpu_custom_call.1} parent=5 // pred_check
        _
      $region34: #{tpu_custom_call.1} parent=5 // pred_check_branch
        %196 = sbr.rel (%p193) target = $region36
      $region35: #{tpu_custom_call.1} parent=5 // pred_region
        %s197 = ssub.s32 %s17, 1
        %s198 = sand.u32 %s30, 1
        %s199 = scalar_lea.sflag [#allocation3], %s198
        %s200 = sand.u32 %s30, 1
        %s201 = smul.addr %s200, 128
        %s202 = scalar_lea.vmem [#allocation2], %s201
        // Predicated region
        $region37: #{tpu_custom_call.1} parent=35 // pred_check
          %p203 = pneg %p43
        $region38: #{tpu_custom_call.1} parent=35 // pred_check_branch
          %205 = sbr.rel (%p203) target = $region40
        $region39: #{tpu_custom_call.1} parent=35 // pred_region
          %206 = dma.done %s199, 2048
        $region40: #{tpu_custom_call.1} parent=35 // pred_fallthru
          _
        // Predicated region
        $region41: #{tpu_custom_call.1} parent=35 // pred_check
          %p207 = pneg %p64
        $region42: #{tpu_custom_call.1} parent=35 // pred_check_branch
          %209 = sbr.rel (%p207) target = $region44
        $region43: #{tpu_custom_call.1} parent=35 // pred_region
          %210 = dma.done [#allocation6], 1024
        $region44: #{tpu_custom_call.1} parent=35 // pred_fallthru
          _
        %s211 = sand.u32 %s30, 1
        %s212 = scalar_lea.sflag [#allocation3], %s211
        %s213 = sand.u32 %s30, 1
        %s214 = smul.addr %s213, 128
        %s215 = scalar_lea.vmem [#allocation2], %s214
        %p216 = pneg %p43
        %p217 = pneg %p40
        %p218 = pneg %p64
        %p219 = pneg %p61
        %p220 = pneg %p85
        %p221 = pneg %p82
        %p222 = pneg %p106
        %p223 = pneg %p103
        %p224 = pneg %p132
        %p225 = pneg %p129
        %s226 = sand.u32 %s119, 1
        %s227 = scalar_lea.sflag [#allocation4], %s226
        %s228 = sand.u32 %s119, 1
        %s229 = smul.addr %s228, 128
        %s230 = scalar_lea.vmem [#allocation7], %s229
        %s231 = smul.u32 32, %s22
        %s232 = smul.u32 32, %s22
        %v234 = vld [vmem:[%s202] sm:$0xf]
        %v235 = vld [vmem:[%s202 + $0x4] sm:$0xf]
        %v236 = vld [vmem:[%s202 + $0x8] sm:$0xf]
        %v237 = vld [vmem:[%s202 + $0xc] sm:$0xf]
        %v238 = vld [vmem:[%s202 + $0x10] sm:$0xf]
        %v239 = vld [vmem:[%s202 + $0x14] sm:$0xf]
        %v240 = vld [vmem:[%s202 + $0x18] sm:$0xf]
        %v241 = vld [vmem:[%s202 + $0x1c] sm:$0xf]
        %v242 = vld [vmem:[%s202 + $0x20] sm:$0xf]
        %v243 = vld [vmem:[%s202 + $0x24] sm:$0xf]
        %v244 = vld [vmem:[%s202 + $0x28] sm:$0xf]
        %v245 = vld [vmem:[%s202 + $0x2c] sm:$0xf]
        %v246 = vld [vmem:[%s202 + $0x30] sm:$0xf]
        %v247 = vld [vmem:[%s202 + $0x34] sm:$0xf]
        %v248 = vld [vmem:[%s202 + $0x38] sm:$0xf]
        %v249 = vld [vmem:[%s202 + $0x3c] sm:$0xf]
        %v250 = vld [vmem:[%s202 + $0x40] sm:$0xf]
        %v251 = vld [vmem:[%s202 + $0x44] sm:$0xf]
        %v252 = vld [vmem:[%s202 + $0x48] sm:$0xf]
        %v253 = vld [vmem:[%s202 + $0x4c] sm:$0xf]
        %v254 = vld [vmem:[%s202 + $0x50] sm:$0xf]
        %v255 = vld [vmem:[%s202 + $0x54] sm:$0xf]
        %v256 = vld [vmem:[%s202 + $0x58] sm:$0xf]
        %v257 = vld [vmem:[%s202 + $0x5c] sm:$0xf]
        %v258 = vld [vmem:[%s202 + $0x60] sm:$0xf]
        %v259 = vld [vmem:[%s202 + $0x64] sm:$0xf]
        %v260 = vld [vmem:[%s202 + $0x68] sm:$0xf]
        %v261 = vld [vmem:[%s202 + $0x6c] sm:$0xf]
        %v262 = vld [vmem:[%s202 + $0x70] sm:$0xf]
        %v263 = vld [vmem:[%s202 + $0x74] sm:$0xf]
        %v264 = vld [vmem:[%s202 + $0x78] sm:$0xf]
        %v265 = vld [vmem:[%s202 + $0x7c] sm:$0xf]
        %v266 = vld [vmem:[#allocation5] sm:$0xf]
        %v267 = vld [vmem:[#allocation5 + $0x4] sm:$0xf]
        %v268 = vld [vmem:[#allocation5 + $0x8] sm:$0xf]
        %v269 = vld [vmem:[#allocation5 + $0xc] sm:$0xf]
        %v270 = vld [vmem:[#allocation5 + $0x10] sm:$0xf]
        %v271 = vld [vmem:[#allocation5 + $0x14] sm:$0xf]
        %v272 = vld [vmem:[#allocation5 + $0x18] sm:$0xf]
        %v273 = vld [vmem:[#allocation5 + $0x1c] sm:$0xf]
        %v274 = vld [vmem:[#allocation5 + $0x20] sm:$0xf]
        %v275 = vld [vmem:[#allocation5 + $0x24] sm:$0xf]
        %v276 = vld [vmem:[#allocation5 + $0x28] sm:$0xf]
        %v277 = vld [vmem:[#allocation5 + $0x2c] sm:$0xf]
        %v278 = vld [vmem:[#allocation5 + $0x30] sm:$0xf]
        %v279 = vld [vmem:[#allocation5 + $0x34] sm:$0xf]
        %v280 = vld [vmem:[#allocation5 + $0x38] sm:$0xf]
        %v281 = vld [vmem:[#allocation5 + $0x3c] sm:$0xf]
        %v314 = vunpack.c.l.b16 %v234
        %v315 = vunpack.c.l.b16 %v235
        %v316 = vunpack.c.l.b16 %v236
        %v317 = vunpack.c.l.b16 %v237
        %v318 = vunpack.c.l.b16 %v238
        %v319 = vunpack.c.l.b16 %v239
        %v320 = vunpack.c.l.b16 %v240
        %v321 = vunpack.c.l.b16 %v241
        %v322 = vunpack.c.l.b16 %v242
        %v323 = vunpack.c.l.b16 %v243
        %v324 = vunpack.c.l.b16 %v244
        %v325 = vunpack.c.l.b16 %v245
        %v326 = vunpack.c.l.b16 %v246
        %v327 = vunpack.c.l.b16 %v247
        %v328 = vunpack.c.l.b16 %v248
        %v329 = vunpack.c.l.b16 %v249
        %v330 = vunpack.c.l.b16 %v250
        %v331 = vunpack.c.l.b16 %v251
        %v332 = vunpack.c.l.b16 %v252
        %v333 = vunpack.c.l.b16 %v253
        %v334 = vunpack.c.l.b16 %v254
        %v335 = vunpack.c.l.b16 %v255
        %v336 = vunpack.c.l.b16 %v256
        %v337 = vunpack.c.l.b16 %v257
        %v338 = vunpack.c.l.b16 %v258
        %v339 = vunpack.c.l.b16 %v259
        %v340 = vunpack.c.l.b16 %v260
        %v341 = vunpack.c.l.b16 %v261
        %v342 = vunpack.c.l.b16 %v262
        %v343 = vunpack.c.l.b16 %v263
        %v344 = vunpack.c.l.b16 %v264
        %v345 = vunpack.c.l.b16 %v265
        %v346 = vpack.c.b16 %v315, %v314
        %v347 = vpack.c.b16 %v317, %v316
        %v348 = vpack.c.b16 %v319, %v318
        %v349 = vpack.c.b16 %v321, %v320
        %v350 = vpack.c.b16 %v323, %v322
        %v351 = vpack.c.b16 %v325, %v324
        %v352 = vpack.c.b16 %v327, %v326
        %v353 = vpack.c.b16 %v329, %v328
        %v354 = vpack.c.b16 %v331, %v330
        %v355 = vpack.c.b16 %v333, %v332
        %v356 = vpack.c.b16 %v335, %v334
        %v357 = vpack.c.b16 %v337, %v336
        %v358 = vpack.c.b16 %v339, %v338
        %v359 = vpack.c.b16 %v341, %v340
        %v360 = vpack.c.b16 %v343, %v342
        %v361 = vpack.c.b16 %v345, %v344
        %v394 = vunpack.c.l.b16 %v266
        %v395 = vunpack.c.l.b16 %v267
        %v396 = vunpack.c.l.b16 %v268
        %v397 = vunpack.c.l.b16 %v269
        %v398 = vunpack.c.l.b16 %v270
        %v399 = vunpack.c.l.b16 %v271
        %v400 = vunpack.c.l.b16 %v272
        %v401 = vunpack.c.l.b16 %v273
        %v402 = vunpack.c.l.b16 %v274
        %v403 = vunpack.c.l.b16 %v275
        %v404 = vunpack.c.l.b16 %v276
        %v405 = vunpack.c.l.b16 %v277
        %v406 = vunpack.c.l.b16 %v278
        %v407 = vunpack.c.l.b16 %v279
        %v408 = vunpack.c.l.b16 %v280
        %v409 = vunpack.c.l.b16 %v281
        %v410 = vpack.c.b16 %v395, %v394
        %v411 = vpack.c.b16 %v397, %v396
        %v412 = vpack.c.b16 %v399, %v398
        %v413 = vpack.c.b16 %v401, %v400
        %v414 = vpack.c.b16 %v403, %v402
        %v415 = vpack.c.b16 %v405, %v404
        %v416 = vpack.c.b16 %v407, %v406
        %v417 = vpack.c.b16 %v409, %v408
        %426 = vmatprep.subr.bf16.mxu0 0
        %427 = vmatpush1.bf16.msra.mxu0 %v410
        %428 = vmatprep.subr.bf16.mxu0 0
        %429 = vmatpush1.bf16.msra.mxu0 %v411
        %430 = vmatprep.subr.bf16.mxu0 0
        %431 = vmatpush1.bf16.msra.mxu0 %v412
        %432 = vmatprep.subr.bf16.mxu0 0
        %433 = vmatpush1.bf16.msra.mxu0 %v413
        %434 = vmatprep.subr.bf16.mxu0 0
        %435 = vmatpush1.bf16.msra.mxu0 %v414
        %436 = vmatprep.subr.bf16.mxu0 0
        %437 = vmatpush1.bf16.msra.mxu0 %v415
        %438 = vmatprep.subr.bf16.mxu0 0
        %439 = vmatpush1.bf16.msra.mxu0 %v416
        %440 = vmatprep.subr.bf16.mxu0 0
        %441 = vmatpush1.bf16.msra.mxu0 %v417
        %442 = vmatprep.subr.bf16.mxu0 0
        %443 = vmatpush1.bf16.msra.mxu0 0
        %444 = vmatprep.subr.bf16.mxu0 0
        %445 = vmatpush1.bf16.msra.mxu0 0
        %446 = vmatprep.subr.bf16.mxu0 0
        %447 = vmatpush1.bf16.msra.mxu0 0
        %448 = vmatprep.subr.bf16.mxu0 0
        %449 = vmatpush1.bf16.msra.mxu0 0
        %450 = vmatprep.subr.bf16.mxu0 0
        %451 = vmatpush1.bf16.msra.mxu0 0
        %452 = vmatprep.subr.bf16.mxu0 0
        %453 = vmatpush1.bf16.msra.mxu0 0
        %454 = vmatprep.subr.bf16.mxu0 0
        %455 = vmatpush1.bf16.msra.mxu0 0
        %456 = vmatprep.subr.bf16.mxu0 0
        %457 = vmatpush1.bf16.msra.mxu0 0
        %458 = vmatprep.mubr.bf16.mxu0 0
        %459 = vmatmul.mubr.bf16.gmra.mrb[0].mxu0 %v346
        %v460 = vpop.f32.mrb[0].mxu0
        %v461 = vadd.f32 0.0, %v460
        %v462 = vpop.f32.mrb[0].mxu0
        %v463 = vpop.f32.mrb[0].mxu0
        %v464 = vadd.f32 0.0, %v463
        %v465 = vpop.f32.mrb[0].mxu0
        %466 = vmatprep.mubr.bf16.mxu0 0
        %467 = vmatmul.mubr.bf16.gmra.mrb[0].mxu0 %v347
        %v468 = vpop.f32.mrb[0].mxu0
        %v469 = vadd.f32 0.0, %v468
        %v470 = vpop.f32.mrb[0].mxu0
        %v471 = vpop.f32.mrb[0].mxu0
        %v472 = vadd.f32 0.0, %v471
        %v473 = vpop.f32.mrb[0].mxu0
        %474 = vmatprep.mubr.bf16.mxu0 0
        %475 = vmatmul.mubr.bf16.gmra.mrb[0].mxu0 %v348
        %v476 = vpop.f32.mrb[0].mxu0
        %v477 = vadd.f32 0.0, %v476
        %v478 = vpop.f32.mrb[0].mxu0
        %v479 = vpop.f32.mrb[0].mxu0
        %v480 = vadd.f32 0.0, %v479
        %v481 = vpop.f32.mrb[0].mxu0
        %482 = vmatprep.mubr.bf16.mxu0 0
        %483 = vmatmul.mubr.bf16.gmra.mrb[0].mxu0 %v349
        %v484 = vpop.f32.mrb[0].mxu0
        %v485 = vadd.f32 0.0, %v484
        %v486 = vpop.f32.mrb[0].mxu0
        %v487 = vpop.f32.mrb[0].mxu0
        %v488 = vadd.f32 0.0, %v487
        %v489 = vpop.f32.mrb[0].mxu0
        %490 = vmatprep.mubr.bf16.mxu0 0
        %491 = vmatmul.mubr.bf16.gmra.mrb[0].mxu0 %v350
        %v492 = vpop.f32.mrb[0].mxu0
        %v493 = vadd.f32 0.0, %v492
        %v494 = vpop.f32.mrb[0].mxu0
        %v495 = vpop.f32.mrb[0].mxu0
        %v496 = vadd.f32 0.0, %v495
        %v497 = vpop.f32.mrb[0].mxu0
        %498 = vmatprep.mubr.bf16.mxu0 0
        %499 = vmatmul.mubr.bf16.gmra.mrb[0].mxu0 %v351
        %v500 = vpop.f32.mrb[0].mxu0
        %v501 = vadd.f32 0.0, %v500
        %v502 = vpop.f32.mrb[0].mxu0
        %v503 = vpop.f32.mrb[0].mxu0
        %v504 = vadd.f32 0.0, %v503
        %v505 = vpop.f32.mrb[0].mxu0
        %506 = vmatprep.mubr.bf16.mxu0 0
        %507 = vmatmul.mubr.bf16.gmra.mrb[0].mxu0 %v352
        %v508 = vpop.f32.mrb[0].mxu0
        %v509 = vadd.f32 0.0, %v508
        %v510 = vpop.f32.mrb[0].mxu0
        %v511 = vpop.f32.mrb[0].mxu0
        %v512 = vadd.f32 0.0, %v511
        %v513 = vpop.f32.mrb[0].mxu0
        %514 = vmatprep.mubr.bf16.mxu0 0
        %515 = vmatmul.mubr.bf16.gmra.mrb[0].mxu0 %v353
        %v516 = vpop.f32.mrb[0].mxu0
        %v517 = vadd.f32 0.0, %v516
        %v518 = vpop.f32.mrb[0].mxu0
        %v519 = vpop.f32.mrb[0].mxu0
        %v520 = vadd.f32 0.0, %v519
        %v521 = vpop.f32.mrb[0].mxu0
        %522 = vmatprep.mubr.bf16.mxu0 0
        %523 = vmatmul.mubr.bf16.gmra.mrb[0].mxu0 %v354
        %v524 = vpop.f32.mrb[0].mxu0
        %v525 = vadd.f32 0.0, %v524
        %v526 = vpop.f32.mrb[0].mxu0
        %v527 = vpop.f32.mrb[0].mxu0
        %v528 = vadd.f32 0.0, %v527
        %v529 = vpop.f32.mrb[0].mxu0
        %530 = vmatprep.mubr.bf16.mxu0 0
        %531 = vmatmul.mubr.bf16.gmra.mrb[0].mxu0 %v355
        %v532 = vpop.f32.mrb[0].mxu0
        %v533 = vadd.f32 0.0, %v532
        %v534 = vpop.f32.mrb[0].mxu0
        %v535 = vpop.f32.mrb[0].mxu0
        %v536 = vadd.f32 0.0, %v535
        %v537 = vpop.f32.mrb[0].mxu0
        %538 = vmatprep.mubr.bf16.mxu0 0
        %539 = vmatmul.mubr.bf16.gmra.mrb[0].mxu0 %v356
        %v540 = vpop.f32.mrb[0].mxu0
        %v541 = vadd.f32 0.0, %v540
        %v542 = vpop.f32.mrb[0].mxu0
        %v543 = vpop.f32.mrb[0].mxu0
        %v544 = vadd.f32 0.0, %v543
        %v545 = vpop.f32.mrb[0].mxu0
        %546 = vmatprep.mubr.bf16.mxu0 0
        %547 = vmatmul.mubr.bf16.gmra.mrb[0].mxu0 %v357
        %v548 = vpop.f32.mrb[0].mxu0
        %v549 = vadd.f32 0.0, %v548
        %v550 = vpop.f32.mrb[0].mxu0
        %v551 = vpop.f32.mrb[0].mxu0
        %v552 = vadd.f32 0.0, %v551
        %v553 = vpop.f32.mrb[0].mxu0
        %554 = vmatprep.mubr.bf16.mxu0 0
        %555 = vmatmul.mubr.bf16.gmra.mrb[0].mxu0 %v358
        %v556 = vpop.f32.mrb[0].mxu0
        %v557 = vadd.f32 0.0, %v556
        %v558 = vpop.f32.mrb[0].mxu0
        %v559 = vpop.f32.mrb[0].mxu0
        %v560 = vadd.f32 0.0, %v559
        %v561 = vpop.f32.mrb[0].mxu0
        %562 = vmatprep.mubr.bf16.mxu0 0
        %563 = vmatmul.mubr.bf16.gmra.mrb[0].mxu0 %v359
        %v564 = vpop.f32.mrb[0].mxu0
        %v565 = vadd.f32 0.0, %v564
        %v566 = vpop.f32.mrb[0].mxu0
        %v567 = vpop.f32.mrb[0].mxu0
        %v568 = vadd.f32 0.0, %v567
        %v569 = vpop.f32.mrb[0].mxu0
        %570 = vmatprep.mubr.bf16.mxu0 0
        %571 = vmatmul.mubr.bf16.gmra.mrb[0].mxu0 %v360
        %v572 = vpop.f32.mrb[0].mxu0
        %v573 = vadd.f32 0.0, %v572
        %v574 = vpop.f32.mrb[0].mxu0
        %v575 = vpop.f32.mrb[0].mxu0
        %v576 = vadd.f32 0.0, %v575
        %v577 = vpop.f32.mrb[0].mxu0
        %578 = vmatprep.mubr.bf16.mxu0 0
        %579 = vmatmul.mubr.bf16.gmra.mrb[0].mxu0 %v361
        %v580 = vpop.f32.mrb[0].mxu0
        %v581 = vadd.f32 0.0, %v580
        %v582 = vpop.f32.mrb[0].mxu0
        %v583 = vpop.f32.mrb[0].mxu0
        %v584 = vadd.f32 0.0, %v583
        %v585 = vpop.f32.mrb[0].mxu0
        %586 = vdwg.mxu0
        %v587 = vld [vmem:[%s2] sm:$0x1]
        %v589 = vlaneseq
        %v590 = vshrl.u32 %v589, 7
        %v591 = vsub.s32 0, %v590
        %v592 = vrot.slane %v587, %v591
        %v594 = vmul.f32 %v461, %v592
        %v595 = vmul.f32 %v464, %v592
        %v596 = vmul.f32 %v469, %v592
        %v597 = vmul.f32 %v472, %v592
        %v598 = vmul.f32 %v477, %v592
        %v599 = vmul.f32 %v480, %v592
        %v600 = vmul.f32 %v485, %v592
        %v601 = vmul.f32 %v488, %v592
        %v602 = vmul.f32 %v493, %v592
        %v603 = vmul.f32 %v496, %v592
        %v604 = vmul.f32 %v501, %v592
        %v605 = vmul.f32 %v504, %v592
        %v606 = vmul.f32 %v509, %v592
        %v607 = vmul.f32 %v512, %v592
        %v608 = vmul.f32 %v517, %v592
        %v609 = vmul.f32 %v520, %v592
        %v610 = vmul.f32 %v525, %v592
        %v611 = vmul.f32 %v528, %v592
        %v612 = vmul.f32 %v533, %v592
        %v613 = vmul.f32 %v536, %v592
        %v614 = vmul.f32 %v541, %v592
        %v615 = vmul.f32 %v544, %v592
        %v616 = vmul.f32 %v549, %v592
        %v617 = vmul.f32 %v552, %v592
        %v618 = vmul.f32 %v557, %v592
        %v619 = vmul.f32 %v560, %v592
        %v620 = vmul.f32 %v565, %v592
        %v621 = vmul.f32 %v568, %v592
        %v622 = vmul.f32 %v573, %v592
        %v623 = vmul.f32 %v576, %v592
        %v624 = vmul.f32 %v581, %v592
        %v625 = vmul.f32 %v584, %v592
        %v626 = vld [vmem:[%s3] sm:$0x1]
        %v628 = vlaneseq
        %v629 = vshrl.u32 %v628, 7
        %v630 = vsub.s32 0, %v629
        %v631 = vrot.slane %v626, %v630
        %v633 = vadd.f32 %v594, %v631
        %v634 = vadd.f32 %v595, %v631
        %v635 = vadd.f32 %v596, %v631
        %v636 = vadd.f32 %v597, %v631
        %v637 = vadd.f32 %v598, %v631
        %v638 = vadd.f32 %v599, %v631
        %v639 = vadd.f32 %v600, %v631
        %v640 = vadd.f32 %v601, %v631
        %v641 = vadd.f32 %v602, %v631
        %v642 = vadd.f32 %v603, %v631
        %v643 = vadd.f32 %v604, %v631
        %v644 = vadd.f32 %v605, %v631
        %v645 = vadd.f32 %v606, %v631
        %v646 = vadd.f32 %v607, %v631
        %v647 = vadd.f32 %v608, %v631
        %v648 = vadd.f32 %v609, %v631
        %v649 = vadd.f32 %v610, %v631
        %v650 = vadd.f32 %v611, %v631
        %v651 = vadd.f32 %v612, %v631
        %v652 = vadd.f32 %v613, %v631
        %v653 = vadd.f32 %v614, %v631
        %v654 = vadd.f32 %v615, %v631
        %v655 = vadd.f32 %v616, %v631
        %v656 = vadd.f32 %v617, %v631
        %v657 = vadd.f32 %v618, %v631
        %v658 = vadd.f32 %v619, %v631
        %v659 = vadd.f32 %v620, %v631
        %v660 = vadd.f32 %v621, %v631
        %v661 = vadd.f32 %v622, %v631
        %v662 = vadd.f32 %v623, %v631
        %v663 = vadd.f32 %v624, %v631
        %v664 = vadd.f32 %v625, %v631
        %v665 = vmax.f32 %v633, 0.0
        %v666 = vmax.f32 %v634, 0.0
        %v667 = vmax.f32 %v635, 0.0
        %v668 = vmax.f32 %v636, 0.0
        %v669 = vmax.f32 %v637, 0.0
        %v670 = vmax.f32 %v638, 0.0
        %v671 = vmax.f32 %v639, 0.0
        %v672 = vmax.f32 %v640, 0.0
        %v673 = vmax.f32 %v641, 0.0
        %v674 = vmax.f32 %v642, 0.0
        %v675 = vmax.f32 %v643, 0.0
        %v676 = vmax.f32 %v644, 0.0
        %v677 = vmax.f32 %v645, 0.0
        %v678 = vmax.f32 %v646, 0.0
        %v679 = vmax.f32 %v647, 0.0
        %v680 = vmax.f32 %v648, 0.0
        %v681 = vmax.f32 %v649, 0.0
        %v682 = vmax.f32 %v650, 0.0
        %v683 = vmax.f32 %v651, 0.0
        %v684 = vmax.f32 %v652, 0.0
        %v685 = vmax.f32 %v653, 0.0
        %v686 = vmax.f32 %v654, 0.0
        %v687 = vmax.f32 %v655, 0.0
        %v688 = vmax.f32 %v656, 0.0
        %v689 = vmax.f32 %v657, 0.0
        %v690 = vmax.f32 %v658, 0.0
        %v691 = vmax.f32 %v659, 0.0
        %v692 = vmax.f32 %v660, 0.0
        %v693 = vmax.f32 %v661, 0.0
        %v694 = vmax.f32 %v662, 0.0
        %v695 = vmax.f32 %v663, 0.0
        %v696 = vmax.f32 %v664, 0.0
        %v697 = vpack.c.bf16 %v666, %v665
        %v698 = vpack.c.bf16 %v668, %v667
        %v699 = vpack.c.bf16 %v670, %v669
        %v700 = vpack.c.bf16 %v672, %v671
        %v701 = vpack.c.bf16 %v674, %v673
        %v702 = vpack.c.bf16 %v676, %v675
        %v703 = vpack.c.bf16 %v678, %v677
        %v704 = vpack.c.bf16 %v680, %v679
        %v705 = vpack.c.bf16 %v682, %v681
        %v706 = vpack.c.bf16 %v684, %v683
        %v707 = vpack.c.bf16 %v686, %v685
        %v708 = vpack.c.bf16 %v688, %v687
        %v709 = vpack.c.bf16 %v690, %v689
        %v710 = vpack.c.bf16 %v692, %v691
        %v711 = vpack.c.bf16 %v694, %v693
        %v712 = vpack.c.bf16 %v696, %v695
        %v729 = vunpack.c.l.b16 %v697
        %v730 = vunpack.c.h.b16 %v697
        %v731 = vunpack.c.l.b16 %v698
        %v732 = vunpack.c.h.b16 %v698
        %v733 = vunpack.c.l.b16 %v699
        %v734 = vunpack.c.h.b16 %v699
        %v735 = vunpack.c.l.b16 %v700
        %v736 = vunpack.c.h.b16 %v700
        %v737 = vunpack.c.l.b16 %v701
        %v738 = vunpack.c.h.b16 %v701
        %v739 = vunpack.c.l.b16 %v702
        %v740 = vunpack.c.h.b16 %v702
        %v741 = vunpack.c.l.b16 %v703
        %v742 = vunpack.c.h.b16 %v703
        %v743 = vunpack.c.l.b16 %v704
        %v744 = vunpack.c.h.b16 %v704
        %v745 = vunpack.c.l.b16 %v705
        %v746 = vunpack.c.h.b16 %v705
        %v747 = vunpack.c.l.b16 %v706
        %v748 = vunpack.c.h.b16 %v706
        %v749 = vunpack.c.l.b16 %v707
        %v750 = vunpack.c.h.b16 %v707
        %v751 = vunpack.c.l.b16 %v708
        %v752 = vunpack.c.h.b16 %v708
        %v753 = vunpack.c.l.b16 %v709
        %v754 = vunpack.c.h.b16 %v709
        %v755 = vunpack.c.l.b16 %v710
        %v756 = vunpack.c.h.b16 %v710
        %v757 = vunpack.c.l.b16 %v711
        %v758 = vunpack.c.h.b16 %v711
        %v759 = vunpack.c.l.b16 %v712
        %v760 = vunpack.c.h.b16 %v712
        %v761 = vpack.c.b16 %v729, %v729
        %v762 = vpack.c.b16 %v730, %v730
        %v763 = vpack.c.b16 %v731, %v731
        %v764 = vpack.c.b16 %v732, %v732
        %v765 = vpack.c.b16 %v733, %v733
        %v766 = vpack.c.b16 %v734, %v734
        %v767 = vpack.c.b16 %v735, %v735
        %v768 = vpack.c.b16 %v736, %v736
        %v769 = vpack.c.b16 %v737, %v737
        %v770 = vpack.c.b16 %v738, %v738
        %v771 = vpack.c.b16 %v739, %v739
        %v772 = vpack.c.b16 %v740, %v740
        %v773 = vpack.c.b16 %v741, %v741
        %v774 = vpack.c.b16 %v742, %v742
        %v775 = vpack.c.b16 %v743, %v743
        %v776 = vpack.c.b16 %v744, %v744
        %v777 = vpack.c.b16 %v745, %v745
        %v778 = vpack.c.b16 %v746, %v746
        %v779 = vpack.c.b16 %v747, %v747
        %v780 = vpack.c.b16 %v748, %v748
        %v781 = vpack.c.b16 %v749, %v749
        %v782 = vpack.c.b16 %v750, %v750
        %v783 = vpack.c.b16 %v751, %v751
        %v784 = vpack.c.b16 %v752, %v752
        %v785 = vpack.c.b16 %v753, %v753
        %v786 = vpack.c.b16 %v754, %v754
        %v787 = vpack.c.b16 %v755, %v755
        %v788 = vpack.c.b16 %v756, %v756
        %v789 = vpack.c.b16 %v757, %v757
        %v790 = vpack.c.b16 %v758, %v758
        %v791 = vpack.c.b16 %v759, %v759
        %v792 = vpack.c.b16 %v760, %v760
        %825 = vst [vmem:[%s230] sm:$0xf] %v761
        %826 = vst [vmem:[%s230 + $0x4] sm:$0xf] %v762
        %827 = vst [vmem:[%s230 + $0x8] sm:$0xf] %v763
        %828 = vst [vmem:[%s230 + $0xc] sm:$0xf] %v764
        %829 = vst [vmem:[%s230 + $0x10] sm:$0xf] %v765
        %830 = vst [vmem:[%s230 + $0x14] sm:$0xf] %v766
        %831 = vst [vmem:[%s230 + $0x18] sm:$0xf] %v767
        %832 = vst [vmem:[%s230 + $0x1c] sm:$0xf] %v768
        %833 = vst [vmem:[%s230 + $0x20] sm:$0xf] %v769
        %834 = vst [vmem:[%s230 + $0x24] sm:$0xf] %v770
        %835 = vst [vmem:[%s230 + $0x28] sm:$0xf] %v771
        %836 = vst [vmem:[%s230 + $0x2c] sm:$0xf] %v772
        %837 = vst [vmem:[%s230 + $0x30] sm:$0xf] %v773
        %838 = vst [vmem:[%s230 + $0x34] sm:$0xf] %v774
        %839 = vst [vmem:[%s230 + $0x38] sm:$0xf] %v775
        %840 = vst [vmem:[%s230 + $0x3c] sm:$0xf] %v776
        %841 = vst [vmem:[%s230 + $0x40] sm:$0xf] %v777
        %842 = vst [vmem:[%s230 + $0x44] sm:$0xf] %v778
        %843 = vst [vmem:[%s230 + $0x48] sm:$0xf] %v779
        %844 = vst [vmem:[%s230 + $0x4c] sm:$0xf] %v780
        %845 = vst [vmem:[%s230 + $0x50] sm:$0xf] %v781
        %846 = vst [vmem:[%s230 + $0x54] sm:$0xf] %v782
        %847 = vst [vmem:[%s230 + $0x58] sm:$0xf] %v783
        %848 = vst [vmem:[%s230 + $0x5c] sm:$0xf] %v784
        %849 = vst [vmem:[%s230 + $0x60] sm:$0xf] %v785
        %850 = vst [vmem:[%s230 + $0x64] sm:$0xf] %v786
        %851 = vst [vmem:[%s230 + $0x68] sm:$0xf] %v787
        %852 = vst [vmem:[%s230 + $0x6c] sm:$0xf] %v788
        %853 = vst [vmem:[%s230 + $0x70] sm:$0xf] %v789
        %854 = vst [vmem:[%s230 + $0x74] sm:$0xf] %v790
        %855 = vst [vmem:[%s230 + $0x78] sm:$0xf] %v791
        %856 = vst [vmem:[%s230 + $0x7c] sm:$0xf] %v792
        %s857 = sand.u32 %s119, 1
        %s858 = scalar_lea.sflag [#allocation4], %s857
        %s859 = sand.u32 %s119, 1
        %s860 = smul.addr %s859, 128
        %s861 = scalar_lea.vmem [#allocation7], %s860
        // Predicated region
        $region45: #{tpu_custom_call.1} parent=35 // pred_check
          %p862 = pneg %p129
        $region46: #{tpu_custom_call.1} parent=35 // pred_check_branch
          %864 = sbr.rel (%p862) target = $region48
        $region47: #{tpu_custom_call.1} parent=35 // pred_region
          %s865 = smul.u32 32, %s22
          %s867 = ssub.s32 2048, 2048
          %868 = vsyncadd %s858, %s867
          %s869 = smul.addr %s865, 64
          %s870 = scalar_lea.hbm %s4, %s869
          %s871 = sshll.u32 %s861, 4
          %s872 = int_to_ptr.vmem [resolvable:$true] %s871
          %877 = dma.vmem_to_hbm [thread:$0]  %s872, 2048, %s870, %s858, 64, 64, 4
        $region48: #{tpu_custom_call.1} parent=35 // pred_fallthru
          _
      $region36: #{tpu_custom_call.1} parent=5 // pred_fallthru
        _
      %p878 = scmp.le.s32.totalorder 2, %s17
      // Predicated region
      $region49: #{tpu_custom_call.1} parent=5 // pred_check
        %p879 = pneg %p878
      $region50: #{tpu_custom_call.1} parent=5 // pred_check_branch
        %881 = sbr.rel (%p879) target = $region52
      $region51: #{tpu_custom_call.1} parent=5 // pred_region
        %s882 = ssub.s32 %s17, 2
        // Predicated region
        $region53: #{tpu_custom_call.1} parent=51 // pred_check
          %p883 = pneg %p135
        $region54: #{tpu_custom_call.1} parent=51 // pred_check_branch
          %885 = sbr.rel (%p883) target = $region56
        $region55: #{tpu_custom_call.1} parent=51 // pred_region
          %s886 = sand.u32 %s120, 1
          %s887 = scalar_lea.sflag [#allocation4], %s886
          %s888 = sand.u32 %s120, 1
          %s889 = smul.addr %s888, 128
          %s890 = scalar_lea.vmem [#allocation7], %s889
          %891 = dma.done %s887, 2048
        $region56: #{tpu_custom_call.1} parent=51 // pred_fallthru
          _
      $region52: #{tpu_custom_call.1} parent=5 // pred_fallthru
        _
    $region6: #{tpu_custom_call.1} parent=1 // loop_footer
      %s21 = sadd.s32 1, %s17
    $region7: #{tpu_custom_call.1} parent=1 // loop_footer_branch
      %16 = sbr.rel target = $region3
    $region8: #{tpu_custom_call.1} parent=1 // loop_exit
      _
    %892 = vsyncpa [#allocation3], 1
    %s893 = scalar_lea.sflag [#allocation3], 1
    %894 = vsyncpa %s893, 1
    %895 = vsyncpa [#allocation6], 1
    %896 = vsyncpa [#allocation4], 1
    %s897 = scalar_lea.sflag [#allocation4], 1
    %898 = vsyncpa %s897, 1

</llo_original>
